<compile_context>
chip_gen: v7x
topology: tpu7x:2x2x1
jax: 0.10.0
libtpu: 0.0.40
codegen_flags: <defaults>
</compile_context>

<pallas_src>
import functools

import jax
import jax.numpy as jnp
from jax.experimental import pallas as pl
from jax.experimental.pallas import tpu as pltpu


# ----------------------------- kernels --------------------------------------


def _proj_kernel(x_ref, w_ref, asrc_ref, adst_ref, h_ref, ssrc_ref, sdst_ref):
    """Per-row-tile projection + per-node attention scores (all heads at once).

    x_ref    : [TM, F_in]
    w_ref    : [F_in, heads*hidden]      (all heads folded into one wide matmul)
    asrc_ref : [heads, heads*hidden]     (block-diagonal att_src)
    adst_ref : [heads, heads*hidden]     (block-diagonal att_dst)
    outputs  : h [TM, heads*hidden], s_src [TM, heads], s_dst [TM, heads]
    """
    h = jnp.dot(x_ref[...], w_ref[...], preferred_element_type=jnp.float32)
    h_ref[...] = h
    ssrc_ref[...] = jax.lax.dot_general(
        h, asrc_ref[...],
        dimension_numbers=(((1,), (1,)), ((), ())),
        preferred_element_type=jnp.float32)
    sdst_ref[...] = jax.lax.dot_general(
        h, adst_ref[...],
        dimension_numbers=(((1,), (1,)), ((), ())),
        preferred_element_type=jnp.float32)


def _attn_kernel(adj_ref, sdst_ref, ssrcT_ref, h_ref, b_ref, out_ref,
                 *, heads, hidden, negative_slope, apply_elu):
    """Per-destination-row-tile masked softmax + aggregation for all heads.

    adj_ref   : [TM, N] int8, adj[i, j] != 0 iff edge j -> i (self-loops included)
    sdst_ref  : [TM, heads]     destination scores for this row tile
    ssrcT_ref : [heads, N]      source scores for all nodes
    h_ref     : [N, heads*hidden]  projected features of all (source) nodes
    b_ref     : [1, heads*hidden]  bias
    out_ref   : [TM, heads*hidden]
    """
    mask = adj_ref[...] > 0                                   # [TM, N] bool
    s_dst = sdst_ref[...]                                     # [TM, heads]
    s_srcT = ssrcT_ref[...]                                   # [heads, N]
    h_bf = h_ref[...].astype(jnp.bfloat16)                    # MXU operands in bf16
    neg_inf = jnp.float32(-1e30)

    for hd in range(heads):                                   # static unroll
        e = s_dst[:, hd:hd + 1] + s_srcT[hd:hd + 1, :]        # [TM, N]
        e = jnp.where(e >= 0, e, negative_slope * e)          # LeakyReLU (f32 VPU)
        e = jnp.where(mask, e, neg_inf)                       # mask non-edges
        e_max = jnp.max(e, axis=-1, keepdims=True)
        p = jnp.exp(e - e_max)                                # masked entries -> 0
        denom = jnp.sum(p, axis=-1, keepdims=True)
        alpha = p * pl.reciprocal(denom, approx=True)         # EUP slot
        agg = jnp.dot(alpha.astype(jnp.bfloat16),
                      h_bf[:, hd * hidden:(hd + 1) * hidden],
                      preferred_element_type=jnp.float32)     # [TM, hidden]
        val = agg + b_ref[:, hd * hidden:(hd + 1) * hidden]
        if apply_elu:
            # clamp before exp so large positives don't overflow in the dead branch
            val = jnp.where(val > 0, val, jnp.exp(jnp.minimum(val, 0.0)) - 1.0)
        out_ref[:, hd * hidden:(hd + 1) * hidden] = val


# ----------------------------- wrappers --------------------------------------


def _vmem_limit(nbytes):
    return int(min(100 * 1024 * 1024, max(32 * 1024 * 1024, 2 * nbytes)))


def _block_diag_att(att):
    """att: [heads, hidden] -> block-diagonal [heads, heads*hidden]."""
    heads, hidden = att.shape
    eye = jnp.eye(heads, dtype=att.dtype)
    return (eye[:, :, None] * att[:, None, :]).reshape(heads, heads * hidden)


def _gat_layer(h_in, adj_i8, w_flat, asrc_bd, adst_bd, bias, *,
               heads, hidden, negative_slope, apply_elu, tm):
    n, f_in = h_in.shape
    width = heads * hidden
    grid = (pl.cdiv(n, tm),)
    parallel = pltpu.CompilerParams(dimension_semantics=("parallel",))

    # --- projection + per-node attention scores (row-tiled, parallel) --------
    proj_bytes = 2 * (tm * f_in * 4 + f_in * width * 4 + 2 * heads * width * 4
                      + tm * width * 4 + 2 * tm * heads * 4)
    h_all, s_src, s_dst = pl.pallas_call(
        _proj_kernel,
        out_shape=(jax.ShapeDtypeStruct((n, width), jnp.float32),
                   jax.ShapeDtypeStruct((n, heads), jnp.float32),
                   jax.ShapeDtypeStruct((n, heads), jnp.float32)),
        grid=grid,
        in_specs=[pl.BlockSpec((tm, f_in), lambda i: (i, 0)),
                  pl.BlockSpec((f_in, width), lambda i: (0, 0)),
                  pl.BlockSpec((heads, width), lambda i: (0, 0)),
                  pl.BlockSpec((heads, width), lambda i: (0, 0))],
        out_specs=(pl.BlockSpec((tm, width), lambda i: (i, 0)),
                   pl.BlockSpec((tm, heads), lambda i: (i, 0)),
                   pl.BlockSpec((tm, heads), lambda i: (i, 0))),
        compiler_params=pltpu.CompilerParams(
            dimension_semantics=("parallel",),
            vmem_limit_bytes=_vmem_limit(proj_bytes)),
    )(h_in, w_flat, asrc_bd, adst_bd)

    s_srcT = jnp.transpose(s_src)          # [heads, N] — tiny wrapper-side plumbing

    # --- masked softmax + aggregation (row-tiled over destinations, parallel) -
    attn_bytes = (2 * (tm * n * 1 + tm * heads * 4 + heads * n * 4 + n * width * 4
                       + tm * width * 4 + width * 4)
                  + 4 * tm * n * 4)        # e/p/alpha temps
    out = pl.pallas_call(
        functools.partial(_attn_kernel, heads=heads, hidden=hidden,
                          negative_slope=negative_slope, apply_elu=apply_elu),
        out_shape=jax.ShapeDtypeStruct((n, width), jnp.float32),
        grid=grid,
        in_specs=[pl.BlockSpec((tm, n), lambda i: (i, 0)),        # adj int8 tile
                  pl.BlockSpec((tm, heads), lambda i: (i, 0)),    # dst scores tile
                  pl.BlockSpec((heads, n), lambda i: (0, 0)),     # src scores (all)
                  pl.BlockSpec((n, width), lambda i: (0, 0)),     # h_all (all sources)
                  pl.BlockSpec((1, width), lambda i: (0, 0))],    # bias
        out_specs=pl.BlockSpec((tm, width), lambda i: (i, 0)),
        compiler_params=pltpu.CompilerParams(
            dimension_semantics=("parallel",),
            vmem_limit_bytes=_vmem_limit(attn_bytes)),
    )(adj_i8, s_dst, s_srcT, h_all, bias)
    return out


def gatnet_forward(x, adj_i8, params, *, negative_slope=0.2, tm=None):
    """x: [N, F_in] f32; adj_i8: [N, N] int8 with adj[i, j]!=0 iff edge j->i
    (self-loops already included, as in GATConv add_self_loops=True)."""
    heads, f_in, hidden = params["w1"].shape
    width, out_channels = params["w2"].shape
    assert width == heads * hidden
    n = x.shape[0]
    if tm is None:
        # TODO(synk): per-generation tuning — keep TM*N within ~48 MiB usable on v7x.
        tm = n if n <= 256 else 256

    w1_flat = jnp.transpose(params["w1"], (1, 0, 2)).reshape(f_in, heads * hidden)
    asrc1_bd = _block_diag_att(params["a_src1"])
    adst1_bd = _block_diag_att(params["a_dst1"])
    b1_flat = params["b1"].reshape(1, heads * hidden)

    h1 = _gat_layer(x, adj_i8, w1_flat, asrc1_bd, adst1_bd, b1_flat,
                    heads=heads, hidden=hidden, negative_slope=negative_slope,
                    apply_elu=True, tm=tm)
    # F.dropout(p=0.6) between layers is identity in eval mode.
    out = _gat_layer(h1, adj_i8, params["w2"], params["a_src2"], params["a_dst2"],
                     params["b2"].reshape(1, out_channels),
                     heads=1, hidden=out_channels, negative_slope=negative_slope,
                     apply_elu=False, tm=tm)
    return out


def init_params(key, in_channels, hidden_channels, out_channels, heads):
    ks = jax.random.split(key, 8)
    scale = 0.1
    return {
        "w1": scale * jax.random.normal(ks[0], (heads, in_channels, hidden_channels), jnp.float32),
        "a_src1": scale * jax.random.normal(ks[1], (heads, hidden_channels), jnp.float32),
        "a_dst1": scale * jax.random.normal(ks[2], (heads, hidden_channels), jnp.float32),
        "b1": scale * jax.random.normal(ks[3], (heads, hidden_channels), jnp.float32),
        "w2": scale * jax.random.normal(ks[4], (heads * hidden_channels, out_channels), jnp.float32),
        "a_src2": scale * jax.random.normal(ks[5], (1, out_channels), jnp.float32),
        "a_dst2": scale * jax.random.normal(ks[6], (1, out_channels), jnp.float32),
        "b2": scale * jax.random.normal(ks[7], (1, out_channels), jnp.float32),
    }


# ----------------------------- pure-JAX reference ----------------------------


def _gat_layer_ref(h_in, adj, w_flat, att_src, att_dst, bias, heads, hidden,
                   slope, elu):
    n = h_in.shape[0]
    h = h_in @ w_flat
    hh = h.reshape(n, heads, hidden)
    s_src = jnp.einsum("nhd,hd->nh", hh, att_src)
    s_dst = jnp.einsum("nhd,hd->nh", hh, att_dst)
    e = s_dst[:, None, :] + s_src[None, :, :]              # [i, j, head]
    e = jnp.where(e >= 0, e, slope * e)
    mask = (adj > 0)[:, :, None]
    e = jnp.where(mask, e, -1e30)
    alpha = jax.nn.softmax(e, axis=1)
    out = jnp.einsum("ijh,jhd->ihd", alpha, hh).reshape(n, heads * hidden) + bias
    return jax.nn.elu(out) if elu else out


def gatnet_forward_ref(x, adj, params):
    heads, f_in, hidden = params["w1"].shape
    w1_flat = jnp.transpose(params["w1"], (1, 0, 2)).reshape(f_in, heads * hidden)
    h1 = _gat_layer_ref(x, adj, w1_flat, params["a_src1"], params["a_dst1"],
                        params["b1"].reshape(-1), heads, hidden, 0.2, True)
    out_channels = params["w2"].shape[1]
    return _gat_layer_ref(h1, adj, params["w2"], params["a_src2"], params["a_dst2"],
                          params["b2"].reshape(-1), 1, out_channels, 0.2, False)


# ----------------------------- demo ------------------------------------------


if __name__ == "__main__":
    N = 16
    in_channels, hidden_channels, out_channels, heads = 16, 32, 8, 8

    key = jax.random.PRNGKey(0)
    k_x, k_p = jax.random.split(key)

    # Node features.
    x = jax.random.normal(k_x, (N, in_channels), jnp.float32)

    # Deterministic bidirectional ring graph: edge_index shape [2, 2N].
    idx = jnp.arange(N)
    src = jnp.concatenate([idx, (idx + 1) % N])
    dst = jnp.concatenate([(idx + 1) % N, idx])
    edge_index = jnp.stack([src, dst])

    # Dense int8 adjacency mask adj[dst, src] with self-loops (add_self_loops=True).
    adj = jnp.zeros((N, N), jnp.int8)
    adj = adj.at[edge_index[1], edge_index[0]].set(1)
    adj = adj.at[idx, idx].set(1)

    params = init_params(k_p, in_channels, hidden_channels, out_channels, heads)

    out = gatnet_forward(x, adj, params)
    out = jax.block_until_ready(out)

    assert out.shape == (N, out_channels)
    assert bool(jnp.all(jnp.isfinite(out)))

    # Loose numeric check vs. pure-JAX reference (bf16 aggregation + approx reciprocal).
    ref = gatnet_forward_ref(x, adj.astype(jnp.float32), params)
    assert bool(jnp.allclose(out, ref, atol=5e-2, rtol=5e-2))

    print("KERNEL_OK")
</pallas_src>

<mosaic_0001>
module attributes {stable_mosaic.version = 11 : i64} {
  func.func @_proj_kernel(%arg0: i32, %arg1: memref<16x16xf32, #tpu.memory_space<vmem>>, %arg2: memref<16x256xf32, #tpu.memory_space<vmem>>, %arg3: memref<8x256xf32, #tpu.memory_space<vmem>>, %arg4: memref<8x256xf32, #tpu.memory_space<vmem>>, %arg5: memref<16x256xf32, #tpu.memory_space<vmem>>, %arg6: memref<16x8xf32, #tpu.memory_space<vmem>>, %arg7: memref<16x8xf32, #tpu.memory_space<vmem>>) attributes {dimension_semantics = [#tpu.dimension_semantics<parallel>], iteration_bounds = array<i64: 1>, scalar_prefetch = 0 : i64, scratch_operands = 0 : i64, tpu.core_type = #tpu.core_type<tc>, window_params = [{transform_indices = @transform_0, window_bounds = array<i64: 16, 16>}, {pipeline_mode = #tpu.pipeline_mode<synchronous>, transform_indices = @transform_1, window_bounds = array<i64: 16, 256>}, {pipeline_mode = #tpu.pipeline_mode<synchronous>, transform_indices = @transform_2, window_bounds = array<i64: 8, 256>}, {pipeline_mode = #tpu.pipeline_mode<synchronous>, transform_indices = @transform_3, window_bounds = array<i64: 8, 256>}, {transform_indices = @transform_4, window_bounds = array<i64: 16, 256>}, {transform_indices = @transform_5, window_bounds = array<i64: 16, 8>}, {transform_indices = @transform_6, window_bounds = array<i64: 16, 8>}]} {
    %c0 = arith.constant 0 : index
    %c0_0 = arith.constant 0 : index
    %0 = vector.load %arg1[%c0, %c0_0] : memref<16x16xf32, #tpu.memory_space<vmem>>, vector<16x16xf32>
    %c0_1 = arith.constant 0 : index
    %c0_2 = arith.constant 0 : index
    %1 = vector.load %arg2[%c0_1, %c0_2] : memref<16x256xf32, #tpu.memory_space<vmem>>, vector<16x256xf32>
    %cst = arith.constant dense<0.000000e+00> : vector<16x256xf32>
    %2 = tpu.matmul %0, %1, %cst {dimension_numbers = #tpu.dot_dimension_numbers<[1], [0], [0], [1], [0, 0, 1, 1], [], []>} : vector<16x16xf32>, vector<16x256xf32>, vector<16x256xf32> -> vector<16x256xf32>
    %c0_3 = arith.constant 0 : index
    %c0_4 = arith.constant 0 : index
    %3 = vector.load %arg5[%c0_3, %c0_4] : memref<16x256xf32, #tpu.memory_space<vmem>>, vector<16x256xf32>
    tpu.vector_store %arg5[%c0_3, %c0_4], %2 {strides = array<i32>} : memref<16x256xf32, #tpu.memory_space<vmem>>, vector<16x256xf32>,
    %c0_5 = arith.constant 0 : index
    %c0_6 = arith.constant 0 : index
    %4 = vector.load %arg3[%c0_5, %c0_6] : memref<8x256xf32, #tpu.memory_space<vmem>>, vector<8x256xf32>
    %cst_7 = arith.constant dense<0.000000e+00> : vector<16x8xf32>
    %5 = tpu.matmul %2, %4, %cst_7 {dimension_numbers = #tpu.dot_dimension_numbers<[1], [1], [0], [0], [0, 0, 1, 0], [], []>} : vector<16x256xf32>, vector<8x256xf32>, vector<16x8xf32> -> vector<16x8xf32>
    %c0_8 = arith.constant 0 : index
    %c0_9 = arith.constant 0 : index
    %6 = vector.load %arg6[%c0_8, %c0_9] : memref<16x8xf32, #tpu.memory_space<vmem>>, vector<16x8xf32>
    tpu.vector_store %arg6[%c0_8, %c0_9], %5 {strides = array<i32>} : memref<16x8xf32, #tpu.memory_space<vmem>>, vector<16x8xf32>,
    %c0_10 = arith.constant 0 : index
    %c0_11 = arith.constant 0 : index
    %7 = vector.load %arg4[%c0_10, %c0_11] : memref<8x256xf32, #tpu.memory_space<vmem>>, vector<8x256xf32>
    %cst_12 = arith.constant dense<0.000000e+00> : vector<16x8xf32>
    %8 = tpu.matmul %2, %7, %cst_12 {dimension_numbers = #tpu.dot_dimension_numbers<[1], [1], [0], [0], [0, 0, 1, 0], [], []>} : vector<16x256xf32>, vector<8x256xf32>, vector<16x8xf32> -> vector<16x8xf32>
    %c0_13 = arith.constant 0 : index
    %c0_14 = arith.constant 0 : index
    %9 = vector.load %arg7[%c0_13, %c0_14] : memref<16x8xf32, #tpu.memory_space<vmem>>, vector<16x8xf32>
    tpu.vector_store %arg7[%c0_13, %c0_14], %8 {strides = array<i32>} : memref<16x8xf32, #tpu.memory_space<vmem>>, vector<16x8xf32>,
    return
  }
  func.func @transform_0(%arg0: i32) -> (i32, i32) {
    %c0_i32 = arith.constant 0 : i32
    %c0_i32_0 = arith.constant 0 : i32
    return %arg0, %c0_i32 : i32, i32
  }
  func.func @transform_1(%arg0: i32) -> (i32, i32) {
    %c0_i32 = arith.constant 0 : i32
    %c0_i32_0 = arith.constant 0 : i32
    %c0_i32_1 = arith.constant 0 : i32
    return %c0_i32, %c0_i32_0 : i32, i32
  }
  func.func @transform_2(%arg0: i32) -> (i32, i32) {
    %c0_i32 = arith.constant 0 : i32
    %c0_i32_0 = arith.constant 0 : i32
    %c0_i32_1 = arith.constant 0 : i32
    return %c0_i32, %c0_i32_0 : i32, i32
  }
  func.func @transform_3(%arg0: i32) -> (i32, i32) {
    %c0_i32 = arith.constant 0 : i32
    %c0_i32_0 = arith.constant 0 : i32
    %c0_i32_1 = arith.constant 0 : i32
    return %c0_i32, %c0_i32_0 : i32, i32
  }
  func.func @transform_4(%arg0: i32) -> (i32, i32) {
    %c0_i32 = arith.constant 0 : i32
    %c0_i32_0 = arith.constant 0 : i32
    return %arg0, %c0_i32 : i32, i32
  }
  func.func @transform_5(%arg0: i32) -> (i32, i32) {
    %c0_i32 = arith.constant 0 : i32
    %c0_i32_0 = arith.constant 0 : i32
    return %arg0, %c0_i32 : i32, i32
  }
  func.func @transform_6(%arg0: i32) -> (i32, i32) {
    %c0_i32 = arith.constant 0 : i32
    %c0_i32_0 = arith.constant 0 : i32
    return %arg0, %c0_i32 : i32, i32
  }
}

</mosaic_0001>

<llo_original>
// kernel: tpu_custom_call.1
$region0: #{tpu_custom_call.1}
  #allocation0 [shape = 'u32[]', space=smem, size = 0x4, offset = 0x4, fixed_abs, tag = 'smem constant byte address 0x4 - core index']
  #allocation1 [shape = 'u32[144,128]{1,0:T(1,128)}', space=vmem, size = 0x12000, scoped, tag = 'internal scratch']
  %s0 = inlined_call_operand.hbm [shape: f32[16,16], index: 0, kind: input, shape index: {}]
  %s1 = inlined_call_operand.hbm [shape: f32[16,256], index: 1, kind: input, shape index: {}]
  %s2 = inlined_call_operand.hbm [shape: f32[8,256], index: 2, kind: input, shape index: {}]
  %s3 = inlined_call_operand.hbm [shape: f32[8,256], index: 3, kind: input, shape index: {}]
  %s4 = inlined_call_operand.hbm [shape: f32[16,256], index: 4, kind: output, shape index: {0}]
  %s5 = inlined_call_operand.vmem [shape: f32[16,8], index: 5, kind: output, shape index: {1}]
  %s6 = inlined_call_operand.vmem [shape: f32[16,8], index: 6, kind: output, shape index: {2}]
  %7 = xla_tuple %s4, %s5, %s6
  %s8 = sld [smem:[#allocation0]]
  $region58: #{tpu_custom_call.1} parent=0
    _
  %s10 = ssub.s32 1, %s8
  %s11 = scalar_select 0, %s10, %s8
  $region1: #{tpu_custom_call.1} parent=0
    #allocation2 [shape = 'u8[8192]{0}', space=vmem, size = 0x2000, scoped, tag = 'input window, operand 0, single buffered']
    #allocation3 [shape = 's32[1]{0}', space=sflag, size = 0x4, scoped, tag = 'scoped memory for tpu_custom_call.1']
    #allocation4 [shape = 's32[1]{0}', space=sflag, size = 0x4, scoped, tag = 'scoped memory for tpu_custom_call.1']
    #allocation5 [shape = 'u8[16384]{0}', space=vmem, size = 0x4000, scoped, tag = 'input window, operand 1, single buffered']
    #allocation6 [shape = 's32[1]{0}', space=sflag, size = 0x4, scoped, tag = 'scoped memory for tpu_custom_call.1']
    #allocation7 [shape = 'u8[8192]{0}', space=vmem, size = 0x2000, scoped, tag = 'input window, operand 2, single buffered']
    #allocation8 [shape = 'u8[8192]{0}', space=vmem, size = 0x2000, scoped, tag = 'input window, operand 3, single buffered']
    #allocation9 [shape = 's32[1]{0}', space=sflag, size = 0x4, scoped, tag = 'scoped memory for tpu_custom_call.1']
    #allocation10 [shape = 'u8[16384]{0}', space=vmem, size = 0x4000, scoped, tag = 'output window, operand 0, single buffered']
    %12 = vsyncpa [#allocation3], 0
    %13 = vsyncpa [#allocation6], 0
    %14 = vsyncpa [#allocation9], 0
    %15 = vsyncpa [#allocation4], 0
    // Predicated region
    $region2: #{tpu_custom_call.1} parent=1 // pred_check
      _
    $region3: #{tpu_custom_call.1} parent=1 // pred_check_branch
      %17 = sbr.rel (0) target = $region5
    $region4: #{tpu_custom_call.1} parent=1 // pred_region
      %s19 = ssub.s32 256, 256
      %20 = vsyncadd [#allocation3], %s19
      %s21 = sshll.u32 [#allocation2], 4
      %s22 = int_to_ptr.vmem [resolvable:$true] %s21
      %27 = dma.hbm_to_vmem [thread:$0]  %s0, 256, %s22, [#allocation3], 128, 128, 8
    $region5: #{tpu_custom_call.1} parent=1 // pred_fallthru
      _
    // Predicated region
    $region6: #{tpu_custom_call.1} parent=1 // pred_check
      _
    $region7: #{tpu_custom_call.1} parent=1 // pred_check_branch
      %29 = sbr.rel (0) target = $region9
    $region8: #{tpu_custom_call.1} parent=1 // pred_region
      %s31 = ssub.s32 512, 512
      %32 = vsyncadd [#allocation6], %s31
      %s33 = sshll.u32 [#allocation5], 4
      %s34 = int_to_ptr.vmem [resolvable:$true] %s33
      %39 = dma.hbm_to_vmem [thread:$0]  %s1, 512, %s34, [#allocation6], 256, 256, 16
    $region9: #{tpu_custom_call.1} parent=1 // pred_fallthru
      _
    // Predicated region
    $region10: #{tpu_custom_call.1} parent=1 // pred_check
      _
    $region11: #{tpu_custom_call.1} parent=1 // pred_check_branch
      %41 = sbr.rel (0) target = $region13
    $region12: #{tpu_custom_call.1} parent=1 // pred_region
      %s43 = ssub.s32 256, 256
      %44 = vsyncadd [#allocation6], %s43
      %s46 = sshll.u32 [#allocation7], 4
      %s47 = int_to_ptr.vmem [resolvable:$true] %s46
      %49 = dma.hbm_to_vmem [thread:$0]  %s2, 256, %s47, [#allocation6]
    $region13: #{tpu_custom_call.1} parent=1 // pred_fallthru
      _
    // Predicated region
    $region14: #{tpu_custom_call.1} parent=1 // pred_check
      _
    $region15: #{tpu_custom_call.1} parent=1 // pred_check_branch
      %51 = sbr.rel (0) target = $region17
    $region16: #{tpu_custom_call.1} parent=1 // pred_region
      %s53 = ssub.s32 256, 256
      %54 = vsyncadd [#allocation9], %s53
      %s56 = sshll.u32 [#allocation8], 4
      %s57 = int_to_ptr.vmem [resolvable:$true] %s56
      %59 = dma.hbm_to_vmem [thread:$0]  %s3, 256, %s57, [#allocation9]
    $region17: #{tpu_custom_call.1} parent=1 // pred_fallthru
      _
    // Predicated region
    $region18: #{tpu_custom_call.1} parent=1 // pred_check
      _
    $region19: #{tpu_custom_call.1} parent=1 // pred_check_branch
      %61 = sbr.rel (0) target = $region21
    $region20: #{tpu_custom_call.1} parent=1 // pred_region
      %62 = dma.done [#allocation3], 256
    $region21: #{tpu_custom_call.1} parent=1 // pred_fallthru
      _
    // Predicated region
    $region22: #{tpu_custom_call.1} parent=1 // pred_check
      _
    $region23: #{tpu_custom_call.1} parent=1 // pred_check_branch
      %64 = sbr.rel (0) target = $region25
    $region24: #{tpu_custom_call.1} parent=1 // pred_region
      %65 = dma.done [#allocation6], 512
    $region25: #{tpu_custom_call.1} parent=1 // pred_fallthru
      _
    // Predicated region
    $region26: #{tpu_custom_call.1} parent=1 // pred_check
      _
    $region27: #{tpu_custom_call.1} parent=1 // pred_check_branch
      %67 = sbr.rel (0) target = $region29
    $region28: #{tpu_custom_call.1} parent=1 // pred_region
      %68 = dma.done [#allocation6], 256
    $region29: #{tpu_custom_call.1} parent=1 // pred_fallthru
      _
    // Predicated region
    $region30: #{tpu_custom_call.1} parent=1 // pred_check
      _
    $region31: #{tpu_custom_call.1} parent=1 // pred_check_branch
      %70 = sbr.rel (0) target = $region33
    $region32: #{tpu_custom_call.1} parent=1 // pred_region
      %71 = dma.done [#allocation9], 256
    $region33: #{tpu_custom_call.1} parent=1 // pred_fallthru
      _
    %v72 = vld [vmem:[#allocation2] sm:$0xff]
    %v73 = vld [vmem:[#allocation2 + $0x8] sm:$0xff]
    %v74 = vld [vmem:[#allocation5] sm:$0xff]
    %v75 = vld [vmem:[#allocation5 + $0x8] sm:$0xff]
    %v76 = vld [vmem:[#allocation5 + $0x10] sm:$0xff]
    %v77 = vld [vmem:[#allocation5 + $0x18] sm:$0xff]
    %vm78 = vcmask 130048
    %v80 = vsel %vm78, %v72, 0
    %v83 = vsel %vm78, %v73, 0
    %85 = vmatprep.subr.mxu0 %v75
    %86 = vmatpush1.msra.mxu0 %v74
    %87 = vmatprep.subr.mxu0 %v77
    %88 = vmatpush1.msra.mxu0 %v76
    %89 = vmatprep.subr.mxu0 0.0
    %90 = vmatpush1.msra.mxu0 0.0
    %91 = vmatprep.subr.mxu0 0.0
    %92 = vmatpush1.msra.mxu0 0.0
    %93 = vmatprep.subr.mxu0 0.0
    %94 = vmatpush1.msra.mxu0 0.0
    %95 = vmatprep.subr.mxu0 0.0
    %96 = vmatpush1.msra.mxu0 0.0
    %97 = vmatprep.subr.mxu0 0.0
    %98 = vmatpush1.msra.mxu0 0.0
    %99 = vmatprep.subr.mxu0 0.0
    %100 = vmatpush1.msra.mxu0 0.0
    %101 = vmatprep.subr.mxu0 0.0
    %102 = vmatpush1.msra.mxu0 0.0
    %103 = vmatprep.subr.mxu0 0.0
    %104 = vmatpush1.msra.mxu0 0.0
    %105 = vmatprep.subr.mxu0 0.0
    %106 = vmatpush1.msra.mxu0 0.0
    %107 = vmatprep.subr.mxu0 0.0
    %108 = vmatpush1.msra.mxu0 0.0
    %109 = vmatprep.subr.mxu0 0.0
    %110 = vmatpush1.msra.mxu0 0.0
    %111 = vmatprep.subr.mxu0 0.0
    %112 = vmatpush1.msra.mxu0 0.0
    %113 = vmatprep.subr.mxu0 0.0
    %114 = vmatpush1.msra.mxu0 0.0
    %115 = vmatprep.subr.mxu0 0.0
    %116 = vmatpush1.msra.mxu0 0.0
    %117 = vmatprep.subr.mxu0 0.0
    %118 = vmatpush1.msra.mxu0 0.0
    %119 = vmatprep.subr.mxu0 0.0
    %120 = vmatpush1.msra.mxu0 0.0
    %121 = vmatprep.subr.mxu0 0.0
    %122 = vmatpush1.msra.mxu0 0.0
    %123 = vmatprep.subr.mxu0 0.0
    %124 = vmatpush1.msra.mxu0 0.0
    %125 = vmatprep.subr.mxu0 0.0
    %126 = vmatpush1.msra.mxu0 0.0
    %127 = vmatprep.subr.mxu0 0.0
    %128 = vmatpush1.msra.mxu0 0.0
    %129 = vmatprep.subr.mxu0 0.0
    %130 = vmatpush1.msra.mxu0 0.0
    %131 = vmatprep.subr.mxu0 0.0
    %132 = vmatpush1.msra.mxu0 0.0
    %133 = vmatprep.subr.mxu0 0.0
    %134 = vmatpush1.msra.mxu0 0.0
    %135 = vmatprep.subr.mxu0 0.0
    %136 = vmatpush1.msra.mxu0 0.0
    %137 = vmatprep.subr.mxu0 0.0
    %138 = vmatpush1.msra.mxu0 0.0
    %139 = vmatprep.subr.mxu0 0.0
    %140 = vmatpush1.msra.mxu0 0.0
    %141 = vmatprep.subr.mxu0 0.0
    %142 = vmatpush1.msra.mxu0 0.0
    %143 = vmatprep.subr.mxu0 0.0
    %144 = vmatpush1.msra.mxu0 0.0
    %145 = vmatprep.subr.mxu0 0.0
    %146 = vmatpush1.msra.mxu0 0.0
    %147 = vmatprep.subr.mxu0 0.0
    %148 = vmatpush1.msra.mxu0 0.0
    %149 = vmatprep.mubr.f32.mxu0 0.0
    %150 = vmatmul.mubr.f32.gmra.mrb[0].mxu0 %v80
    %v151 = vpop.f32.mrb[0].mxu0
    %v152 = vadd.f32 0.0, %v151
    %v153 = vpop.f32.mrb[0].mxu0
    %v154 = vadd.f32 0.0, %v153
    %155 = vmatprep.mubr.f32.mxu0 0.0
    %156 = vmatmul.mubr.f32.gmra.mrb[0].mxu0 %v83
    %v157 = vpop.f32.mrb[0].mxu0
    %v158 = vadd.f32 0.0, %v157
    %v159 = vpop.f32.mrb[0].mxu0
    %v160 = vadd.f32 0.0, %v159
    %161 = vdwg.mxu0
    %162 = vst [vmem:[#allocation10] sm:$0xff] %v152
    %163 = vst [vmem:[#allocation10 + $0x8] sm:$0xff] %v154
    %164 = vst [vmem:[#allocation10 + $0x10] sm:$0xff] %v158
    %165 = vst [vmem:[#allocation10 + $0x18] sm:$0xff] %v160
    %v166 = vld [vmem:[#allocation7] sm:$0xff]
    %v167 = vld [vmem:[#allocation7 + $0x8] sm:$0xff]
    %168 = vmatprep.subr.mxu0 %v167
    %169 = vmatpush1.xpose.msra.mxu0 %v166
    %170 = vmatprep.subr.mxu0 0.0
    %171 = vmatpush1.xpose.msra.mxu0 0.0
    %172 = vmatprep.subr.mxu0 0.0
    %173 = vmatpush1.xpose.msra.mxu0 0.0
    %174 = vmatprep.subr.mxu0 0.0
    %175 = vmatpush1.xpose.msra.mxu0 0.0
    %176 = vmatprep.subr.mxu0 0.0
    %177 = vmatpush1.xpose.msra.mxu0 0.0
    %178 = vmatprep.subr.mxu0 0.0
    %179 = vmatpush1.xpose.msra.mxu0 0.0
    %180 = vmatprep.subr.mxu0 0.0
    %181 = vmatpush1.xpose.msra.mxu0 0.0
    %182 = vmatprep.subr.mxu0 0.0
    %183 = vmatpush1.xpose.msra.mxu0 0.0
    %184 = vmatprep.subr.mxu0 0.0
    %185 = vmatpush1.xpose.msra.mxu0 0.0
    %186 = vmatprep.subr.mxu0 0.0
    %187 = vmatpush1.xpose.msra.mxu0 0.0
    %188 = vmatprep.subr.mxu0 0.0
    %189 = vmatpush1.xpose.msra.mxu0 0.0
    %190 = vmatprep.subr.mxu0 0.0
    %191 = vmatpush1.xpose.msra.mxu0 0.0
    %192 = vmatprep.subr.mxu0 0.0
    %193 = vmatpush1.xpose.msra.mxu0 0.0
    %194 = vmatprep.subr.mxu0 0.0
    %195 = vmatpush1.xpose.msra.mxu0 0.0
    %196 = vmatprep.subr.mxu0 0.0
    %197 = vmatpush1.xpose.msra.mxu0 0.0
    %198 = vmatprep.subr.mxu0 0.0
    %199 = vmatpush1.xpose.msra.mxu0 0.0
    %200 = vmatprep.subr.mxu0 0.0
    %201 = vmatpush1.xpose.msra.mxu0 0.0
    %202 = vmatprep.subr.mxu0 0.0
    %203 = vmatpush1.xpose.msra.mxu0 0.0
    %204 = vmatprep.subr.mxu0 0.0
    %205 = vmatpush1.xpose.msra.mxu0 0.0
    %206 = vmatprep.subr.mxu0 0.0
    %207 = vmatpush1.xpose.msra.mxu0 0.0
    %208 = vmatprep.subr.mxu0 0.0
    %209 = vmatpush1.xpose.msra.mxu0 0.0
    %210 = vmatprep.subr.mxu0 0.0
    %211 = vmatpush1.xpose.msra.mxu0 0.0
    %212 = vmatprep.subr.mxu0 0.0
    %213 = vmatpush1.xpose.msra.mxu0 0.0
    %214 = vmatprep.subr.mxu0 0.0
    %215 = vmatpush1.xpose.msra.mxu0 0.0
    %216 = vmatprep.subr.mxu0 0.0
    %217 = vmatpush1.xpose.msra.mxu0 0.0
    %218 = vmatprep.subr.mxu0 0.0
    %219 = vmatpush1.xpose.msra.mxu0 0.0
    %220 = vmatprep.subr.mxu0 0.0
    %221 = vmatpush1.xpose.msra.mxu0 0.0
    %222 = vmatprep.subr.mxu0 0.0
    %223 = vmatpush1.xpose.msra.mxu0 0.0
    %224 = vmatprep.subr.mxu0 0.0
    %225 = vmatpush1.xpose.msra.mxu0 0.0
    %226 = vmatprep.subr.mxu0 0.0
    %227 = vmatpush1.xpose.msra.mxu0 0.0
    %228 = vmatprep.subr.mxu0 0.0
    %229 = vmatpush1.xpose.msra.mxu0 0.0
    %230 = vmatprep.subr.mxu0 0.0
    %231 = vmatpush1.xpose.msra.mxu0 0.0
    %232 = vmatprep.mubr.f32.mxu0 %v154
    %233 = vmatmul.mubr.f32.gmra.mrb[0].mxu0 %v152
    %v234 = vpop.f32.mrb[0].mxu0
    %v235 = vadd.f32 0.0, %v234
    %v236 = vpop.f32.mrb[0].mxu0
    %237 = vmatprep.mubr.f32.mxu0 %v160
    %238 = vmatmul.mubr.f32.gmra.mrb[0].mxu0 %v158
    %v239 = vpop.f32.mrb[0].mxu0
    %v240 = vadd.f32 0.0, %v239
    %v241 = vpop.f32.mrb[0].mxu0
    %242 = vdwg.mxu0
    %vm243 = vcmask 64512
    %244 = vst.msk [vmem:[%s5] sm:$0xff] %vm243, %v235
    %245 = vst.msk [vmem:[%s5 + $0x8] sm:$0xff] %vm243, %v240
    %v246 = vld [vmem:[#allocation8] sm:$0xff]
    %v247 = vld [vmem:[#allocation8 + $0x8] sm:$0xff]
    %248 = vmatprep.subr.mxu0 %v247
    %249 = vmatpush1.xpose.msra.mxu0 %v246
    %250 = vmatprep.subr.mxu0 0.0
    %251 = vmatpush1.xpose.msra.mxu0 0.0
    %252 = vmatprep.subr.mxu0 0.0
    %253 = vmatpush1.xpose.msra.mxu0 0.0
    %254 = vmatprep.subr.mxu0 0.0
    %255 = vmatpush1.xpose.msra.mxu0 0.0
    %256 = vmatprep.subr.mxu0 0.0
    %257 = vmatpush1.xpose.msra.mxu0 0.0
    %258 = vmatprep.subr.mxu0 0.0
    %259 = vmatpush1.xpose.msra.mxu0 0.0
    %260 = vmatprep.subr.mxu0 0.0
    %261 = vmatpush1.xpose.msra.mxu0 0.0
    %262 = vmatprep.subr.mxu0 0.0
    %263 = vmatpush1.xpose.msra.mxu0 0.0
    %264 = vmatprep.subr.mxu0 0.0
    %265 = vmatpush1.xpose.msra.mxu0 0.0
    %266 = vmatprep.subr.mxu0 0.0
    %267 = vmatpush1.xpose.msra.mxu0 0.0
    %268 = vmatprep.subr.mxu0 0.0
    %269 = vmatpush1.xpose.msra.mxu0 0.0
    %270 = vmatprep.subr.mxu0 0.0
    %271 = vmatpush1.xpose.msra.mxu0 0.0
    %272 = vmatprep.subr.mxu0 0.0
    %273 = vmatpush1.xpose.msra.mxu0 0.0
    %274 = vmatprep.subr.mxu0 0.0
    %275 = vmatpush1.xpose.msra.mxu0 0.0
    %276 = vmatprep.subr.mxu0 0.0
    %277 = vmatpush1.xpose.msra.mxu0 0.0
    %278 = vmatprep.subr.mxu0 0.0
    %279 = vmatpush1.xpose.msra.mxu0 0.0
    %280 = vmatprep.subr.mxu0 0.0
    %281 = vmatpush1.xpose.msra.mxu0 0.0
    %282 = vmatprep.subr.mxu0 0.0
    %283 = vmatpush1.xpose.msra.mxu0 0.0
    %284 = vmatprep.subr.mxu0 0.0
    %285 = vmatpush1.xpose.msra.mxu0 0.0
    %286 = vmatprep.subr.mxu0 0.0
    %287 = vmatpush1.xpose.msra.mxu0 0.0
    %288 = vmatprep.subr.mxu0 0.0
    %289 = vmatpush1.xpose.msra.mxu0 0.0
    %290 = vmatprep.subr.mxu0 0.0
    %291 = vmatpush1.xpose.msra.mxu0 0.0
    %292 = vmatprep.subr.mxu0 0.0
    %293 = vmatpush1.xpose.msra.mxu0 0.0
    %294 = vmatprep.subr.mxu0 0.0
    %295 = vmatpush1.xpose.msra.mxu0 0.0
    %296 = vmatprep.subr.mxu0 0.0
    %297 = vmatpush1.xpose.msra.mxu0 0.0
    %298 = vmatprep.subr.mxu0 0.0
    %299 = vmatpush1.xpose.msra.mxu0 0.0
    %300 = vmatprep.subr.mxu0 0.0
    %301 = vmatpush1.xpose.msra.mxu0 0.0
    %302 = vmatprep.subr.mxu0 0.0
    %303 = vmatpush1.xpose.msra.mxu0 0.0
    %304 = vmatprep.subr.mxu0 0.0
    %305 = vmatpush1.xpose.msra.mxu0 0.0
    %306 = vmatprep.subr.mxu0 0.0
    %307 = vmatpush1.xpose.msra.mxu0 0.0
    %308 = vmatprep.subr.mxu0 0.0
    %309 = vmatpush1.xpose.msra.mxu0 0.0
    %310 = vmatprep.subr.mxu0 0.0
    %311 = vmatpush1.xpose.msra.mxu0 0.0
    %312 = vmatprep.mubr.f32.mxu0 %v154
    %313 = vmatmul.mubr.f32.gmra.mrb[0].mxu0 %v152
    %v314 = vpop.f32.mrb[0].mxu0
    %v315 = vadd.f32 0.0, %v314
    %v316 = vpop.f32.mrb[0].mxu0
    %317 = vmatprep.mubr.f32.mxu0 %v160
    %318 = vmatmul.mubr.f32.gmra.mrb[0].mxu0 %v158
    %v319 = vpop.f32.mrb[0].mxu0
    %v320 = vadd.f32 0.0, %v319
    %v321 = vpop.f32.mrb[0].mxu0
    %322 = vdwg.mxu0
    %323 = vst.msk [vmem:[%s6] sm:$0xff] %vm243, %v315
    %324 = vst.msk [vmem:[%s6 + $0x8] sm:$0xff] %vm243, %v320
    // Predicated region
    $region34: #{tpu_custom_call.1} parent=1 // pred_check
      _
    $region35: #{tpu_custom_call.1} parent=1 // pred_check_branch
      %326 = sbr.rel (0) target = $region37
    $region36: #{tpu_custom_call.1} parent=1 // pred_region
      %s328 = ssub.s32 512, 512
      %329 = vsyncadd [#allocation4], %s328
      %s330 = sshll.u32 [#allocation10], 4
      %s331 = int_to_ptr.vmem [resolvable:$true] %s330
      %336 = dma.vmem_to_hbm [thread:$0]  %s331, 512, %s4, [#allocation4], 256, 256, 16
    $region37: #{tpu_custom_call.1} parent=1 // pred_fallthru
      _
    // Predicated region
    $region38: #{tpu_custom_call.1} parent=1 // pred_check
      _
    $region39: #{tpu_custom_call.1} parent=1 // pred_check_branch
      %338 = sbr.rel (0) target = $region41
    $region40: #{tpu_custom_call.1} parent=1 // pred_region
      _
    $region41: #{tpu_custom_call.1} parent=1 // pred_fallthru
      _
    // Predicated region
    $region42: #{tpu_custom_call.1} parent=1 // pred_check
      _
    $region43: #{tpu_custom_call.1} parent=1 // pred_check_branch
      %340 = sbr.rel (0) target = $region45
    $region44: #{tpu_custom_call.1} parent=1 // pred_region
      _
    $region45: #{tpu_custom_call.1} parent=1 // pred_fallthru
      _
    // Predicated region
    $region46: #{tpu_custom_call.1} parent=1 // pred_check
      _
    $region47: #{tpu_custom_call.1} parent=1 // pred_check_branch
      %342 = sbr.rel (0) target = $region49
    $region48: #{tpu_custom_call.1} parent=1 // pred_region
      %343 = dma.done [#allocation4], 512
    $region49: #{tpu_custom_call.1} parent=1 // pred_fallthru
      _
    // Predicated region
    $region50: #{tpu_custom_call.1} parent=1 // pred_check
      _
    $region51: #{tpu_custom_call.1} parent=1 // pred_check_branch
      %345 = sbr.rel (0) target = $region53
    $region52: #{tpu_custom_call.1} parent=1 // pred_region
      _
    $region53: #{tpu_custom_call.1} parent=1 // pred_fallthru
      _
    // Predicated region
    $region54: #{tpu_custom_call.1} parent=1 // pred_check
      _
    $region55: #{tpu_custom_call.1} parent=1 // pred_check_branch
      %347 = sbr.rel (0) target = $region57
    $region56: #{tpu_custom_call.1} parent=1 // pred_region
      _
    $region57: #{tpu_custom_call.1} parent=1 // pred_fallthru
      _
    %348 = vsyncpa [#allocation3], 1
    %349 = vsyncpa [#allocation6], 1
    %350 = vsyncpa [#allocation9], 1
    %351 = vsyncpa [#allocation4], 1

</llo_original>
